<compile_context>
chip_gen: v7x
topology: tpu7x:2x2x1
jax: 0.10.0
libtpu: 0.0.40
codegen_flags: <defaults>
</compile_context>

<pallas_src>
import functools
import math

import jax
import jax.numpy as jnp
from jax.experimental import pallas as pl
from jax.experimental.pallas import tpu as pltpu

NEG_FLOOR = -1e30   # finite "-inf" floor so the online-softmax running max never hits -inf


# ------------------------------------------------------------------ kernels

def gat_fc_kernel(x_ref, w_ref, p_ref, feat_ref, eler_ref):
    """fc (x @ W) + attention logits (feat @ proj) for one row tile of nodes."""
    x = x_ref[...].astype(jnp.bfloat16)                        # (tm, Din)
    w = w_ref[...]                                             # (Din, H*F) bf16
    feat = jnp.dot(x, w, preferred_element_type=jnp.float32)   # (tm, H*F)  f32
    # el/er for all heads via a single narrow matmul; keep f32 for the softmax path.
    eler_ref[...] = jnp.dot(feat, p_ref[...],
                            preferred_element_type=jnp.float32)  # (tm, 2H)
    feat_ref[...] = feat.astype(jnp.bfloat16)


def gat_attn_kernel(elt_ref, er_ref, feat_ref, adj_ref, out_ref,
                    m_ref, l_ref, acc_ref,
                    *, num_heads, out_feats, neg_slope):
    """Edge-softmax + aggregation for one (dst tile, src tile) pair.

    Online (flash-style) softmax over the src-tile grid axis with running
    max / sum / accumulator kept in VMEM scratch.
    """
    j = pl.program_id(1)

    @pl.when(j == 0)
    def _init():
        m_ref[...] = jnp.full_like(m_ref, NEG_FLOOR)
        l_ref[...] = jnp.zeros_like(l_ref)
        acc_ref[...] = jnp.zeros_like(acc_ref)

    mask = adj_ref[...] > 0                                    # (tm, tk) -- hoisted over heads
    feat = feat_ref[...]                                       # (tk, H*F) bf16

    for h in range(num_heads):                                 # H is small & static -> unrolled
        lo, hi = h * out_feats, (h + 1) * out_feats
        el_row = elt_ref[h:h + 1, :]                           # (1, tk)  src logits (lane-dense)
        er_col = er_ref[:, h:h + 1]                            # (tm, 1)  dst logits

        e = er_col + el_row                                    # (tm, tk)
        e = jnp.where(e > 0, e, neg_slope * e)                 # leaky_relu
        e = jnp.where(mask, e, -jnp.inf)                       # exp(-inf - finite) == 0

        m_old = m_ref[:, h:h + 1]
        m_new = jnp.maximum(m_old, jnp.max(e, axis=-1, keepdims=True))
        alpha = jnp.exp(m_old - m_new)
        p = jnp.exp(e - m_new)                                 # masked edges contribute exactly 0

        l_ref[:, h:h + 1] = alpha * l_ref[:, h:h + 1] + jnp.sum(p, axis=-1, keepdims=True)
        acc_ref[:, lo:hi] = alpha * acc_ref[:, lo:hi] + jnp.dot(
            p.astype(jnp.bfloat16), feat[:, lo:hi],
            preferred_element_type=jnp.float32)
        m_ref[:, h:h + 1] = m_new

    @pl.when(j == pl.num_programs(1) - 1)
    def _finalize():
        for h in range(num_heads):
            lo, hi = h * out_feats, (h + 1) * out_feats
            s = jnp.maximum(l_ref[:, h:h + 1], 1e-20)          # zero-in-degree guard
            acc_ref[:, lo:hi] = acc_ref[:, lo:hi] * pl.reciprocal(s, approx=True)
        out_ref[...] = acc_ref[...]                            # one lane-dense (tm, H*F) store


def bn_relu_kernel(x_ref, o_ref, *, eps):
    # BatchNorm1d (training-mode batch statistics, biased variance), gamma=1, beta=0,
    # followed by ReLU. Each block holds the FULL batch for its feature columns, so the
    # per-feature statistics are exact.
    x = x_ref[...]                                             # (N, td)
    mean = jnp.mean(x, axis=0, keepdims=True)
    var = jnp.mean(jnp.square(x - mean), axis=0, keepdims=True)
    o_ref[...] = jnp.maximum((x - mean) * jax.lax.rsqrt(var + eps), 0.0)


# ------------------------------------------------------------------ wrappers

def _tile(n, pref=128):
    return pref if n % pref == 0 else n


def gat_conv(x, w, proj, adj_bf16, *, num_heads, out_feats, neg_slope=0.2):
    n, din = x.shape
    dout = num_heads * out_feats
    two_h = 2 * num_heads
    tm = _tile(n)
    tk = tm

    # ---- kernel 1: fc + attention logits, row-tiled over nodes -------------
    feat, eler = pl.pallas_call(
        gat_fc_kernel,
        out_shape=(jax.ShapeDtypeStruct((n, dout), jnp.bfloat16),
                   jax.ShapeDtypeStruct((n, two_h), jnp.float32)),
        grid_spec=pltpu.PrefetchScalarGridSpec(
            num_scalar_prefetch=0,
            grid=(n // tm,),
            in_specs=[pl.BlockSpec((tm, din), lambda i: (i, 0)),
                      pl.BlockSpec((din, dout), lambda i: (0, 0)),
                      pl.BlockSpec((dout, two_h), lambda i: (0, 0))],
            out_specs=(pl.BlockSpec((tm, dout), lambda i: (i, 0)),
                       pl.BlockSpec((tm, two_h), lambda i: (i, 0))),
        ),
        compiler_params=pltpu.CompilerParams(dimension_semantics=("parallel",)),
    )(x, w.astype(jnp.bfloat16), proj)

    # tiny transposes/slices in plain XLA so the attention kernel never transposes
    el_t = jnp.transpose(eler[:, :num_heads])                  # (H, N)  src logits, lane-dense
    er = eler[:, num_heads:]                                   # (N, H)  dst logits

    # ---- kernel 2: edge-softmax + aggregation (flash-style) ----------------
    attn = functools.partial(gat_attn_kernel, num_heads=num_heads,
                             out_feats=out_feats, neg_slope=neg_slope)
    out = pl.pallas_call(
        attn,
        out_shape=jax.ShapeDtypeStruct((n, dout), jnp.float32),
        grid_spec=pltpu.PrefetchScalarGridSpec(
            num_scalar_prefetch=0,
            grid=(n // tm, n // tk),                           # (dst tiles, src tiles)
            in_specs=[pl.BlockSpec((num_heads, tk), lambda i, j: (0, j)),   # el^T
                      pl.BlockSpec((tm, num_heads), lambda i, j: (i, 0)),   # er
                      pl.BlockSpec((tk, dout), lambda i, j: (j, 0)),        # feat_src (bf16)
                      pl.BlockSpec((tm, tk), lambda i, j: (i, j))],         # adj (bf16)
            out_specs=pl.BlockSpec((tm, dout), lambda i, j: (i, 0)),
            scratch_shapes=[pltpu.VMEM((tm, num_heads), jnp.float32),   # running max
                            pltpu.VMEM((tm, num_heads), jnp.float32),   # running sum
                            pltpu.VMEM((tm, dout), jnp.float32)],       # accumulator
        ),
        compiler_params=pltpu.CompilerParams(
            dimension_semantics=("parallel", "arbitrary")),
    )(el_t, er, feat, adj_bf16)
    return out


def bn_relu(x, *, eps=1e-5):
    n, d = x.shape
    td = _tile(d)
    kernel = functools.partial(bn_relu_kernel, eps=eps)
    # TODO(synk): for very large N a two-pass / cross-tile BN reduction would be needed;
    # here the full batch fits in one column block so the statistics are exact.
    return pl.pallas_call(
        kernel,
        out_shape=jax.ShapeDtypeStruct((n, d), jnp.float32),
        grid_spec=pltpu.PrefetchScalarGridSpec(
            num_scalar_prefetch=0,
            grid=(d // td,),
            in_specs=[pl.BlockSpec((n, td), lambda j: (0, j))],
            out_specs=pl.BlockSpec((n, td), lambda j: (0, j)),
        ),
        compiler_params=pltpu.CompilerParams(dimension_semantics=("parallel",)),
    )(x)


# ------------------------------------------------------------------ model

def xavier_normal(key, shape, fan_in, fan_out, gain):
    std = gain * math.sqrt(2.0 / (fan_in + fan_out))
    return jax.random.normal(key, shape, dtype=jnp.float32) * std


def build_proj(attn_l, attn_r):
    """(H*F, 2H) matrix P with P[h*F+f, h] = attn_l[h, f], P[h*F+f, H+h] = attn_r[h, f]."""
    h, f = attn_l.shape
    proj = jnp.zeros((h * f, 2 * h), dtype=jnp.float32)
    for i in range(h):
        proj = proj.at[i * f:(i + 1) * f, i].set(attn_l[i])
        proj = proj.at[i * f:(i + 1) * f, h + i].set(attn_r[i])
    return proj


def init_gat_params(key, in_feats, n_classes, n_hidden, n_layers, n_heads):
    gain = math.sqrt(2.0)  # nn.init.calculate_gain('relu')
    params = []
    for i in range(n_layers):
        in_hidden = n_heads * n_hidden if i > 0 else in_feats
        out_hidden = n_hidden if i < n_layers - 1 else n_classes
        num_heads = n_heads if i < n_layers - 1 else 1
        key, k_w, k_l, k_r = jax.random.split(key, 4)
        # nn.Linear weight is (out, in); stored transposed (in, out).
        w = xavier_normal(k_w, (in_hidden, num_heads * out_hidden),
                          fan_in=in_hidden, fan_out=num_heads * out_hidden, gain=gain)
        al = xavier_normal(k_l, (num_heads, out_hidden),
                           fan_in=num_heads * out_hidden, fan_out=out_hidden, gain=gain)
        ar = xavier_normal(k_r, (num_heads, out_hidden),
                           fan_in=num_heads * out_hidden, fan_out=out_hidden, gain=gain)
        params.append(dict(w=w, attn_l=al, attn_r=ar, proj=build_proj(al, ar),
                           num_heads=num_heads, out_feats=out_hidden))
    bias_last = jnp.zeros((n_classes,), jnp.float32)  # ElementWiseLinear bias (zeros)
    return params, bias_last


def gat_forward(params, bias_last, adj_bf16, feat, n_layers):
    h = feat
    for i in range(n_layers):
        p = params[i]
        h = gat_conv(h, p["w"], p["proj"], adj_bf16,
                     num_heads=p["num_heads"], out_feats=p["out_feats"])
        if i < n_layers - 1:
            # h.flatten(1) is already the (N, H*F) layout we produce.
            h = bn_relu(h)               # BatchNorm1d + ReLU; dropout(p=0) is identity
    # last layer has 1 head: h is (N, 1*n_classes) so h.mean(1) == h
    return h + bias_last[None, :]


# ------------------------------------------------------------------ pure-JAX reference

def gat_conv_ref(x, w, attn_l, attn_r, adj, num_heads, out_feats, neg_slope=0.2):
    n = x.shape[0]
    feat = (x @ w).reshape(n, num_heads, out_feats)
    el = jnp.einsum('nhf,hf->nh', feat, attn_l)
    er = jnp.einsum('nhf,hf->nh', feat, attn_r)
    e = er[:, None, :] + el[None, :, :]                    # (dst, src, H)
    e = jnp.where(e > 0, e, neg_slope * e)
    mask = (adj > 0)[:, :, None]
    e = jnp.where(mask, e, -jnp.inf)
    e = e - jnp.max(e, axis=1, keepdims=True)
    p = jnp.where(mask, jnp.exp(e), 0.0)
    p = p / jnp.sum(p, axis=1, keepdims=True)
    rst = jnp.einsum('dsh,shf->dhf', p, feat)
    return rst.reshape(n, num_heads * out_feats)


def gat_forward_ref(params, bias_last, adj, feat, n_layers, eps=1e-5):
    h = feat
    for i in range(n_layers):
        p = params[i]
        h = gat_conv_ref(h, p["w"], p["attn_l"], p["attn_r"], adj,
                         p["num_heads"], p["out_feats"])
        if i < n_layers - 1:
            mean = jnp.mean(h, axis=0, keepdims=True)
            var = jnp.mean((h - mean) ** 2, axis=0, keepdims=True)
            h = jnp.maximum((h - mean) * jax.lax.rsqrt(var + eps), 0.0)
    return h + bias_last[None, :]


# ------------------------------------------------------------------ main

if __name__ == "__main__":
    N = 256          # nodes (2x2 tile grid of 128 -> exercises online softmax + parallel dst)
    in_feats = 64
    n_hidden = 64
    n_heads = 2
    n_classes = 32
    n_layers = 2

    key = jax.random.PRNGKey(0)
    k_feat, k_adj, k_params = jax.random.split(key, 3)

    feat = jax.random.normal(k_feat, (N, in_feats), dtype=jnp.float32)

    # Random directed graph; add self-loops so every node has in-degree >= 1
    # (GATConv asserts no zero-in-degree nodes).
    adj = jax.random.bernoulli(k_adj, 0.05, (N, N)).astype(jnp.float32)
    adj = jnp.maximum(adj, jnp.eye(N, dtype=jnp.float32))   # adj[dst, src]
    adj_bf16 = adj.astype(jnp.bfloat16)                     # compact mask for HBM/VMEM traffic

    params, bias_last = init_gat_params(
        k_params, in_feats, n_classes, n_hidden, n_layers, n_heads)

    out = gat_forward(params, bias_last, adj_bf16, feat, n_layers)
    out = jax.block_until_ready(out)

    assert out.shape == (N, n_classes)
    assert bool(jnp.all(jnp.isfinite(out)))

    # Loose-tolerance check against the f32 pure-JAX reference (kernel uses bf16 MXU
    # operands + approx reciprocal, so allow a few percent).
    ref = gat_forward_ref(params, bias_last, adj, feat, n_layers)
    max_err = float(jnp.max(jnp.abs(out - ref)))
    tol = 5e-2 * float(jnp.max(jnp.abs(ref))) + 5e-2
    assert max_err < tol, f"max_err={max_err} tol={tol}"

    print("KERNEL_OK")
</pallas_src>

<mosaic_0001>
module attributes {stable_mosaic.version = 11 : i64} {
  func.func @gat_fc_kernel(%arg0: i32, %arg1: memref<128x64xf32, #tpu.memory_space<vmem>>, %arg2: memref<64x128xbf16, #tpu.memory_space<vmem>>, %arg3: memref<128x4xf32, #tpu.memory_space<vmem>>, %arg4: memref<128x128xbf16, #tpu.memory_space<vmem>>, %arg5: memref<128x4xf32, #tpu.memory_space<vmem>>) attributes {dimension_semantics = [#tpu.dimension_semantics<parallel>], iteration_bounds = array<i64: 2>, scalar_prefetch = 0 : i64, scratch_operands = 0 : i64, tpu.core_type = #tpu.core_type<tc>, window_params = [{transform_indices = @transform_0, window_bounds = array<i64: 128, 64>}, {pipeline_mode = #tpu.pipeline_mode<synchronous>, transform_indices = @transform_1, window_bounds = array<i64: 64, 128>}, {pipeline_mode = #tpu.pipeline_mode<synchronous>, transform_indices = @transform_2, window_bounds = array<i64: 128, 4>}, {transform_indices = @transform_3, window_bounds = array<i64: 128, 128>}, {transform_indices = @transform_4, window_bounds = array<i64: 128, 4>}]} {
    %c0 = arith.constant 0 : index
    %c0_0 = arith.constant 0 : index
    %0 = vector.load %arg1[%c0, %c0_0] : memref<128x64xf32, #tpu.memory_space<vmem>>, vector<128x64xf32>
    %1 = arith.truncf %0 : vector<128x64xf32> to vector<128x64xbf16>
    %c0_1 = arith.constant 0 : index
    %c0_2 = arith.constant 0 : index
    %2 = vector.load %arg2[%c0_1, %c0_2] : memref<64x128xbf16, #tpu.memory_space<vmem>>, vector<64x128xbf16>
    %cst = arith.constant dense<0.000000e+00> : vector<128x128xf32>
    %3 = tpu.matmul %1, %2, %cst {dimension_numbers = #tpu.dot_dimension_numbers<[1], [0], [0], [1], [0, 0, 1, 1], [], []>} : vector<128x64xbf16>, vector<64x128xbf16>, vector<128x128xf32> -> vector<128x128xf32>
    %c0_3 = arith.constant 0 : index
    %c0_4 = arith.constant 0 : index
    %4 = vector.load %arg3[%c0_3, %c0_4] : memref<128x4xf32, #tpu.memory_space<vmem>>, vector<128x4xf32>
    %cst_5 = arith.constant dense<0.000000e+00> : vector<128x4xf32>
    %5 = tpu.matmul %3, %4, %cst_5 {dimension_numbers = #tpu.dot_dimension_numbers<[1], [0], [0], [1], [0, 0, 1, 1], [], []>} : vector<128x128xf32>, vector<128x4xf32>, vector<128x4xf32> -> vector<128x4xf32>
    %c0_6 = arith.constant 0 : index
    %c0_7 = arith.constant 0 : index
    %6 = vector.load %arg5[%c0_6, %c0_7] : memref<128x4xf32, #tpu.memory_space<vmem>>, vector<128x4xf32>
    tpu.vector_store %arg5[%c0_6, %c0_7], %5 {strides = array<i32>} : memref<128x4xf32, #tpu.memory_space<vmem>>, vector<128x4xf32>,
    %7 = arith.truncf %3 : vector<128x128xf32> to vector<128x128xbf16>
    %c0_8 = arith.constant 0 : index
    %c0_9 = arith.constant 0 : index
    %8 = vector.load %arg4[%c0_8, %c0_9] : memref<128x128xbf16, #tpu.memory_space<vmem>>, vector<128x128xbf16>
    tpu.vector_store %arg4[%c0_8, %c0_9], %7 {strides = array<i32>} : memref<128x128xbf16, #tpu.memory_space<vmem>>, vector<128x128xbf16>,
    return
  }
  func.func @transform_0(%arg0: i32) -> (i32, i32) {
    %c0_i32 = arith.constant 0 : i32
    %c0_i32_0 = arith.constant 0 : i32
    return %arg0, %c0_i32 : i32, i32
  }
  func.func @transform_1(%arg0: i32) -> (i32, i32) {
    %c0_i32 = arith.constant 0 : i32
    %c0_i32_0 = arith.constant 0 : i32
    %c0_i32_1 = arith.constant 0 : i32
    return %c0_i32, %c0_i32_0 : i32, i32
  }
  func.func @transform_2(%arg0: i32) -> (i32, i32) {
    %c0_i32 = arith.constant 0 : i32
    %c0_i32_0 = arith.constant 0 : i32
    %c0_i32_1 = arith.constant 0 : i32
    return %c0_i32, %c0_i32_0 : i32, i32
  }
  func.func @transform_3(%arg0: i32) -> (i32, i32) {
    %c0_i32 = arith.constant 0 : i32
    %c0_i32_0 = arith.constant 0 : i32
    return %arg0, %c0_i32 : i32, i32
  }
  func.func @transform_4(%arg0: i32) -> (i32, i32) {
    %c0_i32 = arith.constant 0 : i32
    %c0_i32_0 = arith.constant 0 : i32
    return %arg0, %c0_i32 : i32, i32
  }
}

</mosaic_0001>

<llo_original>
// kernel: tpu_custom_call.1
$region0: #{tpu_custom_call.1}
  #allocation0 [shape = 'u32[]', space=smem, size = 0x4, offset = 0x4, fixed_abs, tag = 'smem constant byte address 0x4 - core index']
  #allocation1 [shape = 'u32[144,128]{1,0:T(1,128)}', space=vmem, size = 0x12000, scoped, tag = 'internal scratch']
  %s0 = inlined_call_operand.vmem [shape: f32[256,64], index: 0, kind: input, shape index: {}]
  %s1 = inlined_call_operand.vmem [shape: bf16[64,128], index: 1, kind: input, shape index: {}]
  %s2 = inlined_call_operand.vmem [shape: f32[128,4], index: 2, kind: input, shape index: {}]
  %s3 = inlined_call_operand.hbm [shape: bf16[256,128], index: 3, kind: output, shape index: {0}]
  %s4 = inlined_call_operand.vmem [shape: f32[256,4], index: 4, kind: output, shape index: {1}]
  %5 = xla_tuple %s3, %s4
  %s6 = sld [smem:[#allocation0]]
  $region53: #{tpu_custom_call.1} parent=0
    _
  %s8 = ssub.s32 1, %s6
  %s9 = scalar_select 0, %s8, %s6
  $region1: #{tpu_custom_call.1} parent=0
    #allocation2 [shape = 'u8[65536]{0}', space=vmem, size = 0x10000, scoped, tag = 'output window, operand 0']
    #allocation3 [shape = 's32[2]{0}', space=sflag, size = 0x8, scoped, tag = 'scoped memory for tpu_custom_call.1']
    %10 = vsyncpa [#allocation3], 0
    %s11 = scalar_lea.sflag [#allocation3], 1
    %12 = vsyncpa %s11, 0
    loop: start=0, step=1, limit=4
    $region2: #{tpu_custom_call.1} parent=1 // loop_pre_header
      _
    $region3: #{tpu_custom_call.1} parent=1 // loop_header
      %s14 = sphi 0, %s18
      %p15 = scmp.ge.s32.totalorder %s14, 4
      %s24 = sphi 0, %s26
      %s27 = sphi 0, %s24
      %s28 = sphi 0, %s27
      %s44 = sphi 0, %s28
      %s48 = sphi 0, %s48
      %s50 = sphi 0, %s48
      %s51 = sphi 0, %s50
      %s65 = sphi 0, %s51
      %s69 = sphi 0, %s69
      %s71 = sphi 0, %s69
      %s72 = sphi 0, %s71
      %s86 = sphi 0, %s72
      %s92 = sphi 0, %s94
      %s95 = sphi 0, %s92
      %s96 = sphi 0, %s95
      %s112 = sphi 0, %s96
      %s118 = sphi 0, %s120
      %s121 = sphi 0, %s118
      %s122 = sphi 0, %s121
      %s138 = sphi 0, %s122
    $region4: #{tpu_custom_call.1} parent=1 // loop_header_branch
      %17 = sbr.rel (%p15) target = $region8
    $region5: #{tpu_custom_call.1} parent=1 // loop_body
      %s19 = ssub.s32 %s14, 1
      %s20 = ssub.s32 %s14, 2
      %s21 = sadd.s32 %s14, 1
      %s22 = ssub.s32 %s14, %s21
      %p23 = scmp.eq.s32.totalorder %s22, 0
      %s25 = sadd.s32 %s24, 1
      %s26 = scalar_select %p23, %s24, %s25
      %p29 = pneg %p23
      %p30 = scmp.eq.s32.totalorder %s14, 1
      %p31 = por %p29, %p30
      %p32 = scmp.ne.s32.totalorder %s24, %s27
      %p33 = scmp.eq.s32.totalorder %s14, 0
      %p34 = por %p32, %p33
      %p35 = scmp.ne.s32.totalorder %s24, %s27
      %p36 = scmp.eq.s32.totalorder %s19, 1
      %p37 = por %p35, %p36
      %p38 = scmp.ne.s32.totalorder %s27, %s28
      %p39 = scmp.eq.s32.totalorder %s19, 0
      %p40 = por %p38, %p39
      %p41 = scmp.ne.s32.totalorder %s27, %s28
      %p42 = scmp.eq.s32.totalorder %s20, 1
      %p43 = por %p41, %p42
      %p45 = scmp.ne.s32.totalorder %s28, %s44
      %p46 = scmp.eq.s32.totalorder %s20, 0
      %p47 = por %p45, %p46
      %s49 = sadd.s32 %s48, 1
      %p52 = scmp.eq.s32.totalorder %s14, 1
      %p53 = scmp.ne.s32.totalorder %s48, %s50
      %p54 = scmp.eq.s32.totalorder %s14, 0
      %p55 = por %p53, %p54
      %p56 = scmp.ne.s32.totalorder %s48, %s50
      %p57 = scmp.eq.s32.totalorder %s19, 1
      %p58 = por %p56, %p57
      %p59 = scmp.ne.s32.totalorder %s50, %s51
      %p60 = scmp.eq.s32.totalorder %s19, 0
      %p61 = por %p59, %p60
      %p62 = scmp.ne.s32.totalorder %s50, %s51
      %p63 = scmp.eq.s32.totalorder %s20, 1
      %p64 = por %p62, %p63
      %p66 = scmp.ne.s32.totalorder %s51, %s65
      %p67 = scmp.eq.s32.totalorder %s20, 0
      %p68 = por %p66, %p67
      %s70 = sadd.s32 %s69, 1
      %p73 = scmp.eq.s32.totalorder %s14, 1
      %p74 = scmp.ne.s32.totalorder %s69, %s71
      %p75 = scmp.eq.s32.totalorder %s14, 0
      %p76 = por %p74, %p75
      %p77 = scmp.ne.s32.totalorder %s69, %s71
      %p78 = scmp.eq.s32.totalorder %s19, 1
      %p79 = por %p77, %p78
      %p80 = scmp.ne.s32.totalorder %s71, %s72
      %p81 = scmp.eq.s32.totalorder %s19, 0
      %p82 = por %p80, %p81
      %p83 = scmp.ne.s32.totalorder %s71, %s72
      %p84 = scmp.eq.s32.totalorder %s20, 1
      %p85 = por %p83, %p84
      %p87 = scmp.ne.s32.totalorder %s72, %s86
      %p88 = scmp.eq.s32.totalorder %s20, 0
      %p89 = por %p87, %p88
      %s90 = ssub.s32 %s14, %s21
      %p91 = scmp.eq.s32.totalorder %s90, 0
      %s93 = sadd.s32 %s92, 1
      %s94 = scalar_select %p91, %s92, %s93
      %p97 = pneg %p91
      %p98 = scmp.eq.s32.totalorder %s14, 1
      %p99 = por %p97, %p98
      %p100 = scmp.ne.s32.totalorder %s92, %s95
      %p101 = scmp.eq.s32.totalorder %s14, 0
      %p102 = por %p100, %p101
      %p103 = scmp.ne.s32.totalorder %s92, %s95
      %p104 = scmp.eq.s32.totalorder %s19, 1
      %p105 = por %p103, %p104
      %p106 = scmp.ne.s32.totalorder %s95, %s96
      %p107 = scmp.eq.s32.totalorder %s19, 0
      %p108 = por %p106, %p107
      %p109 = scmp.ne.s32.totalorder %s95, %s96
      %p110 = scmp.eq.s32.totalorder %s20, 1
      %p111 = por %p109, %p110
      %p113 = scmp.ne.s32.totalorder %s96, %s112
      %p114 = scmp.eq.s32.totalorder %s20, 0
      %p115 = por %p113, %p114
      %s116 = ssub.s32 %s14, %s21
      %p117 = scmp.eq.s32.totalorder %s116, 0
      %s119 = sadd.s32 %s118, 1
      %s120 = scalar_select %p117, %s118, %s119
      %p123 = pneg %p117
      %p124 = scmp.eq.s32.totalorder %s14, 1
      %p125 = por %p123, %p124
      %p126 = scmp.ne.s32.totalorder %s118, %s121
      %p127 = scmp.eq.s32.totalorder %s14, 0
      %p128 = por %p126, %p127
      %p129 = scmp.ne.s32.totalorder %s118, %s121
      %p130 = scmp.eq.s32.totalorder %s19, 1
      %p131 = por %p129, %p130
      %p132 = scmp.ne.s32.totalorder %s121, %s122
      %p133 = scmp.eq.s32.totalorder %s19, 0
      %p134 = por %p132, %p133
      %p135 = scmp.ne.s32.totalorder %s121, %s122
      %p136 = scmp.eq.s32.totalorder %s20, 1
      %p137 = por %p135, %p136
      %p139 = scmp.ne.s32.totalorder %s122, %s138
      %p140 = scmp.eq.s32.totalorder %s20, 0
      %p141 = por %p139, %p140
      %p142 = scmp.le.s32.totalorder 1, %s14
      %p143 = scmp.lt.s32.totalorder %s14, 3
      %p144 = pnand %p142, %p143
      %p145 = pneg %p144
      // Predicated region
      $region9: #{tpu_custom_call.1} parent=5 // pred_check
        _
      $region10: #{tpu_custom_call.1} parent=5 // pred_check_branch
        %147 = sbr.rel (%p144) target = $region12
      $region11: #{tpu_custom_call.1} parent=5 // pred_region
        %s148 = ssub.s32 %s14, 1
        // Predicated region
        $region13: #{tpu_custom_call.1} parent=11 // pred_check
          %p149 = pneg %p61
        $region14: #{tpu_custom_call.1} parent=11 // pred_check_branch
          %151 = sbr.rel (%p149) target = $region16
        $region15: #{tpu_custom_call.1} parent=11 // pred_region
          _
        $region16: #{tpu_custom_call.1} parent=11 // pred_fallthru
          _
        // Predicated region
        $region17: #{tpu_custom_call.1} parent=11 // pred_check
          %p152 = pneg %p82
        $region18: #{tpu_custom_call.1} parent=11 // pred_check_branch
          %154 = sbr.rel (%p152) target = $region20
        $region19: #{tpu_custom_call.1} parent=11 // pred_region
          _
        $region20: #{tpu_custom_call.1} parent=11 // pred_fallthru
          _
      $region12: #{tpu_custom_call.1} parent=5 // pred_fallthru
        _
      %p155 = scmp.lt.s32.totalorder %s14, 2
      // Predicated region
      $region21: #{tpu_custom_call.1} parent=5 // pred_check
        %p156 = pneg %p155
      $region22: #{tpu_custom_call.1} parent=5 // pred_check_branch
        %158 = sbr.rel (%p156) target = $region24
      $region23: #{tpu_custom_call.1} parent=5 // pred_region
        // Predicated region
        $region25: #{tpu_custom_call.1} parent=23 // pred_check
          %p159 = pneg %p34
        $region26: #{tpu_custom_call.1} parent=23 // pred_check_branch
          %161 = sbr.rel (%p159) target = $region28
        $region27: #{tpu_custom_call.1} parent=23 // pred_region
          %s162 = smul.u32 16, %s14
          %p163 = scmp.lt.s32.totalorder %s162, 31
          %s164 = scalar_select %p163, %s162, 31
          %s165 = smul.addr %s164, 8
          %s166 = scalar_lea.vmem %s0, %s165
          %s167 = smul.u32 16, %s14
        $region28: #{tpu_custom_call.1} parent=23 // pred_fallthru
          _
      $region24: #{tpu_custom_call.1} parent=5 // pred_fallthru
        _
      %p168 = scmp.le.s32.totalorder 1, %s14
      %p169 = scmp.lt.s32.totalorder %s14, 3
      %p170 = pnand %p168, %p169
      %p171 = pneg %p170
      // Predicated region
      $region29: #{tpu_custom_call.1} parent=5 // pred_check
        _
      $region30: #{tpu_custom_call.1} parent=5 // pred_check_branch
        %173 = sbr.rel (%p170) target = $region32
      $region31: #{tpu_custom_call.1} parent=5 // pred_region
        %s174 = ssub.s32 %s14, 1
        %s175 = smul.u32 16, %s19
        %p176 = scmp.lt.s32.totalorder %s175, 31
        %s177 = scalar_select %p176, %s175, 31
        %s178 = smul.addr %s177, 8
        %s179 = scalar_lea.vmem %s0, %s178
        %p180 = pneg %p40
        %p181 = pneg %p37
        %p182 = pneg %p61
        %p183 = pneg %p58
        %p184 = pneg %p82
        %p185 = pneg %p79
        %p186 = pneg %p108
        %p187 = pneg %p105
        %s188 = sand.u32 %s95, 1
        %s189 = scalar_lea.sflag [#allocation3], %s188
        %s190 = sand.u32 %s95, 1
        %s191 = smul.addr %s190, 64
        %s192 = scalar_lea.vmem [#allocation2], %s191
        %p193 = pneg %p134
        %p194 = pneg %p131
        %s195 = smul.u32 16, %s19
        %p196 = scmp.lt.s32.totalorder %s195, 31
        %s197 = scalar_select %p196, %s195, 31
        %s198 = smul.addr %s197, 8
        %s199 = scalar_lea.vmem %s4, %s198
        %s200 = smul.u32 16, %s19
        %p201 = scmp.lt.s32.totalorder %s200, 31
        %s202 = scalar_select %p201, %s200, 31
        %s203 = smul.addr %s202, 8
        %s204 = scalar_lea.vmem %s0, %s203
        %s205 = smul.u32 16, %s19
        %s206 = smul.u32 16, %s19
        %s207 = smul.u32 16, %s19
        %p208 = scmp.lt.s32.totalorder %s207, 31
        %s209 = scalar_select %p208, %s207, 31
        %s210 = smul.addr %s209, 8
        %s211 = scalar_lea.vmem %s4, %s210
        %s212 = smul.u32 16, %s19
        %v214 = vld [vmem:[%s204] sm:$0xff]
        %v215 = vld [vmem:[%s204 + $0x8] sm:$0xff]
        %v216 = vld [vmem:[%s204 + $0x10] sm:$0xff]
        %v217 = vld [vmem:[%s204 + $0x18] sm:$0xff]
        %v218 = vld [vmem:[%s204 + $0x20] sm:$0xff]
        %v219 = vld [vmem:[%s204 + $0x28] sm:$0xff]
        %v220 = vld [vmem:[%s204 + $0x30] sm:$0xff]
        %v221 = vld [vmem:[%s204 + $0x38] sm:$0xff]
        %v222 = vld [vmem:[%s204 + $0x40] sm:$0xff]
        %v223 = vld [vmem:[%s204 + $0x48] sm:$0xff]
        %v224 = vld [vmem:[%s204 + $0x50] sm:$0xff]
        %v225 = vld [vmem:[%s204 + $0x58] sm:$0xff]
        %v226 = vld [vmem:[%s204 + $0x60] sm:$0xff]
        %v227 = vld [vmem:[%s204 + $0x68] sm:$0xff]
        %v228 = vld [vmem:[%s204 + $0x70] sm:$0xff]
        %v229 = vld [vmem:[%s204 + $0x78] sm:$0xff]
        %v230 = vpack.c.bf16 %v215, %v214
        %v231 = vpack.c.bf16 %v217, %v216
        %v232 = vpack.c.bf16 %v219, %v218
        %v233 = vpack.c.bf16 %v221, %v220
        %v234 = vpack.c.bf16 %v223, %v222
        %v235 = vpack.c.bf16 %v225, %v224
        %v236 = vpack.c.bf16 %v227, %v226
        %v237 = vpack.c.bf16 %v229, %v228
        %v238 = vld [vmem:[%s1] sm:$0xf]
        %v239 = vld [vmem:[%s1 + $0x4] sm:$0xf]
        %v240 = vld [vmem:[%s1 + $0x8] sm:$0xf]
        %v241 = vld [vmem:[%s1 + $0xc] sm:$0xf]
        %v242 = vld [vmem:[%s1 + $0x10] sm:$0xf]
        %v243 = vld [vmem:[%s1 + $0x14] sm:$0xf]
        %v244 = vld [vmem:[%s1 + $0x18] sm:$0xf]
        %v245 = vld [vmem:[%s1 + $0x1c] sm:$0xf]
        %v254 = vunpack.c.l.b16 %v238
        %v255 = vunpack.c.l.b16 %v239
        %v256 = vunpack.c.l.b16 %v240
        %v257 = vunpack.c.l.b16 %v241
        %v258 = vunpack.c.l.b16 %v242
        %v259 = vunpack.c.l.b16 %v243
        %v260 = vunpack.c.l.b16 %v244
        %v261 = vunpack.c.l.b16 %v245
        %v262 = vpack.c.b16 %v255, %v254
        %v263 = vpack.c.b16 %v257, %v256
        %v264 = vpack.c.b16 %v259, %v258
        %v265 = vpack.c.b16 %v261, %v260
        %vm270 = vcmask 523264
        %v272 = vsel %vm270, %v230, 0
        %v275 = vsel %vm270, %v231, 0
        %v278 = vsel %vm270, %v232, 0
        %v281 = vsel %vm270, %v233, 0
        %v284 = vsel %vm270, %v234, 0
        %v287 = vsel %vm270, %v235, 0
        %v290 = vsel %vm270, %v236, 0
        %v293 = vsel %vm270, %v237, 0
        %295 = vmatprep.subr.bf16.mxu0 0
        %296 = vmatpush1.bf16.msra.mxu0 %v262
        %297 = vmatprep.subr.bf16.mxu0 0
        %298 = vmatpush1.bf16.msra.mxu0 %v263
        %299 = vmatprep.subr.bf16.mxu0 0
        %300 = vmatpush1.bf16.msra.mxu0 %v264
        %301 = vmatprep.subr.bf16.mxu0 0
        %302 = vmatpush1.bf16.msra.mxu0 %v265
        %303 = vmatprep.subr.bf16.mxu0 0
        %304 = vmatpush1.bf16.msra.mxu0 0
        %305 = vmatprep.subr.bf16.mxu0 0
        %306 = vmatpush1.bf16.msra.mxu0 0
        %307 = vmatprep.subr.bf16.mxu0 0
        %308 = vmatpush1.bf16.msra.mxu0 0
        %309 = vmatprep.subr.bf16.mxu0 0
        %310 = vmatpush1.bf16.msra.mxu0 0
        %311 = vmatprep.subr.bf16.mxu0 0
        %312 = vmatpush1.bf16.msra.mxu0 0
        %313 = vmatprep.subr.bf16.mxu0 0
        %314 = vmatpush1.bf16.msra.mxu0 0
        %315 = vmatprep.subr.bf16.mxu0 0
        %316 = vmatpush1.bf16.msra.mxu0 0
        %317 = vmatprep.subr.bf16.mxu0 0
        %318 = vmatpush1.bf16.msra.mxu0 0
        %319 = vmatprep.subr.bf16.mxu0 0
        %320 = vmatpush1.bf16.msra.mxu0 0
        %321 = vmatprep.subr.bf16.mxu0 0
        %322 = vmatpush1.bf16.msra.mxu0 0
        %323 = vmatprep.subr.bf16.mxu0 0
        %324 = vmatpush1.bf16.msra.mxu0 0
        %325 = vmatprep.subr.bf16.mxu0 0
        %326 = vmatpush1.bf16.msra.mxu0 0
        %327 = vmatprep.mubr.bf16.mxu0 0
        %328 = vmatmul.mubr.bf16.gmra.mrb[0].mxu0 %v272
        %v329 = vpop.f32.mrb[0].mxu0
        %v330 = vadd.f32 0.0, %v329
        %v331 = vpop.f32.mrb[0].mxu0
        %v332 = vpop.f32.mrb[0].mxu0
        %v333 = vadd.f32 0.0, %v332
        %v334 = vpop.f32.mrb[0].mxu0
        %335 = vmatprep.mubr.bf16.mxu0 0
        %336 = vmatmul.mubr.bf16.gmra.mrb[0].mxu0 %v275
        %v337 = vpop.f32.mrb[0].mxu0
        %v338 = vadd.f32 0.0, %v337
        %v339 = vpop.f32.mrb[0].mxu0
        %v340 = vpop.f32.mrb[0].mxu0
        %v341 = vadd.f32 0.0, %v340
        %v342 = vpop.f32.mrb[0].mxu0
        %343 = vmatprep.mubr.bf16.mxu0 0
        %344 = vmatmul.mubr.bf16.gmra.mrb[0].mxu0 %v278
        %v345 = vpop.f32.mrb[0].mxu0
        %v346 = vadd.f32 0.0, %v345
        %v347 = vpop.f32.mrb[0].mxu0
        %v348 = vpop.f32.mrb[0].mxu0
        %v349 = vadd.f32 0.0, %v348
        %v350 = vpop.f32.mrb[0].mxu0
        %351 = vmatprep.mubr.bf16.mxu0 0
        %352 = vmatmul.mubr.bf16.gmra.mrb[0].mxu0 %v281
        %v353 = vpop.f32.mrb[0].mxu0
        %v354 = vadd.f32 0.0, %v353
        %v355 = vpop.f32.mrb[0].mxu0
        %v356 = vpop.f32.mrb[0].mxu0
        %v357 = vadd.f32 0.0, %v356
        %v358 = vpop.f32.mrb[0].mxu0
        %359 = vmatprep.mubr.bf16.mxu0 0
        %360 = vmatmul.mubr.bf16.gmra.mrb[0].mxu0 %v284
        %v361 = vpop.f32.mrb[0].mxu0
        %v362 = vadd.f32 0.0, %v361
        %v363 = vpop.f32.mrb[0].mxu0
        %v364 = vpop.f32.mrb[0].mxu0
        %v365 = vadd.f32 0.0, %v364
        %v366 = vpop.f32.mrb[0].mxu0
        %367 = vmatprep.mubr.bf16.mxu0 0
        %368 = vmatmul.mubr.bf16.gmra.mrb[0].mxu0 %v287
        %v369 = vpop.f32.mrb[0].mxu0
        %v370 = vadd.f32 0.0, %v369
        %v371 = vpop.f32.mrb[0].mxu0
        %v372 = vpop.f32.mrb[0].mxu0
        %v373 = vadd.f32 0.0, %v372
        %v374 = vpop.f32.mrb[0].mxu0
        %375 = vmatprep.mubr.bf16.mxu0 0
        %376 = vmatmul.mubr.bf16.gmra.mrb[0].mxu0 %v290
        %v377 = vpop.f32.mrb[0].mxu0
        %v378 = vadd.f32 0.0, %v377
        %v379 = vpop.f32.mrb[0].mxu0
        %v380 = vpop.f32.mrb[0].mxu0
        %v381 = vadd.f32 0.0, %v380
        %v382 = vpop.f32.mrb[0].mxu0
        %383 = vmatprep.mubr.bf16.mxu0 0
        %384 = vmatmul.mubr.bf16.gmra.mrb[0].mxu0 %v293
        %v385 = vpop.f32.mrb[0].mxu0
        %v386 = vadd.f32 0.0, %v385
        %v387 = vpop.f32.mrb[0].mxu0
        %v388 = vpop.f32.mrb[0].mxu0
        %v389 = vadd.f32 0.0, %v388
        %v390 = vpop.f32.mrb[0].mxu0
        %391 = vdwg.mxu0
        %v392 = vld [vmem:[%s2] sm:$0xff]
        %v393 = vld [vmem:[%s2 + $0x8] sm:$0xff]
        %v394 = vld [vmem:[%s2 + $0x10] sm:$0xff]
        %v395 = vld [vmem:[%s2 + $0x18] sm:$0xff]
        %v396 = vld [vmem:[%s2 + $0x20] sm:$0xff]
        %v397 = vld [vmem:[%s2 + $0x28] sm:$0xff]
        %v398 = vld [vmem:[%s2 + $0x30] sm:$0xff]
        %v399 = vld [vmem:[%s2 + $0x38] sm:$0xff]
        %v400 = vld [vmem:[%s2 + $0x40] sm:$0xff]
        %v401 = vld [vmem:[%s2 + $0x48] sm:$0xff]
        %v402 = vld [vmem:[%s2 + $0x50] sm:$0xff]
        %v403 = vld [vmem:[%s2 + $0x58] sm:$0xff]
        %v404 = vld [vmem:[%s2 + $0x60] sm:$0xff]
        %v405 = vld [vmem:[%s2 + $0x68] sm:$0xff]
        %v406 = vld [vmem:[%s2 + $0x70] sm:$0xff]
        %v407 = vld [vmem:[%s2 + $0x78] sm:$0xff]
        %408 = vmatprep.subr.mxu0 0.0
        %409 = vmatpush1.msra.mxu0 %v392
        %410 = vmatprep.subr.mxu0 0.0
        %411 = vmatpush1.msra.mxu0 %v393
        %412 = vmatprep.subr.mxu0 0.0
        %413 = vmatpush1.msra.mxu0 %v394
        %414 = vmatprep.subr.mxu0 0.0
        %415 = vmatpush1.msra.mxu0 %v395
        %416 = vmatprep.subr.mxu0 0.0
        %417 = vmatpush1.msra.mxu0 %v396
        %418 = vmatprep.subr.mxu0 0.0
        %419 = vmatpush1.msra.mxu0 %v397
        %420 = vmatprep.subr.mxu0 0.0
        %421 = vmatpush1.msra.mxu0 %v398
        %422 = vmatprep.subr.mxu0 0.0
        %423 = vmatpush1.msra.mxu0 %v399
        %424 = vmatprep.subr.mxu0 0.0
        %425 = vmatpush1.msra.mxu0 %v400
        %426 = vmatprep.subr.mxu0 0.0
        %427 = vmatpush1.msra.mxu0 %v401
        %428 = vmatprep.subr.mxu0 0.0
        %429 = vmatpush1.msra.mxu0 %v402
        %430 = vmatprep.subr.mxu0 0.0
        %431 = vmatpush1.msra.mxu0 %v403
        %432 = vmatprep.subr.mxu0 0.0
        %433 = vmatpush1.msra.mxu0 %v404
        %434 = vmatprep.subr.mxu0 0.0
        %435 = vmatpush1.msra.mxu0 %v405
        %436 = vmatprep.subr.mxu0 0.0
        %437 = vmatpush1.msra.mxu0 %v406
        %438 = vmatprep.subr.mxu0 0.0
        %439 = vmatpush1.msra.mxu0 %v407
        %440 = vmatprep.subr.mxu0 0.0
        %441 = vmatpush1.msra.mxu0 0.0
        %442 = vmatprep.subr.mxu0 0.0
        %443 = vmatpush1.msra.mxu0 0.0
        %444 = vmatprep.subr.mxu0 0.0
        %445 = vmatpush1.msra.mxu0 0.0
        %446 = vmatprep.subr.mxu0 0.0
        %447 = vmatpush1.msra.mxu0 0.0
        %448 = vmatprep.subr.mxu0 0.0
        %449 = vmatpush1.msra.mxu0 0.0
        %450 = vmatprep.subr.mxu0 0.0
        %451 = vmatpush1.msra.mxu0 0.0
        %452 = vmatprep.subr.mxu0 0.0
        %453 = vmatpush1.msra.mxu0 0.0
        %454 = vmatprep.subr.mxu0 0.0
        %455 = vmatpush1.msra.mxu0 0.0
        %456 = vmatprep.subr.mxu0 0.0
        %457 = vmatpush1.msra.mxu0 0.0
        %458 = vmatprep.subr.mxu0 0.0
        %459 = vmatpush1.msra.mxu0 0.0
        %460 = vmatprep.subr.mxu0 0.0
        %461 = vmatpush1.msra.mxu0 0.0
        %462 = vmatprep.subr.mxu0 0.0
        %463 = vmatpush1.msra.mxu0 0.0
        %464 = vmatprep.subr.mxu0 0.0
        %465 = vmatpush1.msra.mxu0 0.0
        %466 = vmatprep.subr.mxu0 0.0
        %467 = vmatpush1.msra.mxu0 0.0
        %468 = vmatprep.subr.mxu0 0.0
        %469 = vmatpush1.msra.mxu0 0.0
        %470 = vmatprep.subr.mxu0 0.0
        %471 = vmatpush1.msra.mxu0 0.0
        %472 = vmatprep.mubr.f32.mxu0 0.0
        %473 = vmatmul.mubr.f32.gmra.mrb[0].mxu0 %v330
        %v474 = vpop.f32.mrb[0].mxu0
        %v475 = vadd.f32 0.0, %v474
        %v476 = vpop.f32.mrb[0].mxu0
        %477 = vmatprep.mubr.f32.mxu0 0.0
        %478 = vmatmul.mubr.f32.gmra.mrb[0].mxu0 %v333
        %v479 = vpop.f32.mrb[0].mxu0
        %v480 = vadd.f32 0.0, %v479
        %v481 = vpop.f32.mrb[0].mxu0
        %482 = vmatprep.mubr.f32.mxu0 0.0
        %483 = vmatmul.mubr.f32.gmra.mrb[0].mxu0 %v338
        %v484 = vpop.f32.mrb[0].mxu0
        %v485 = vadd.f32 0.0, %v484
        %v486 = vpop.f32.mrb[0].mxu0
        %487 = vmatprep.mubr.f32.mxu0 0.0
        %488 = vmatmul.mubr.f32.gmra.mrb[0].mxu0 %v341
        %v489 = vpop.f32.mrb[0].mxu0
        %v490 = vadd.f32 0.0, %v489
        %v491 = vpop.f32.mrb[0].mxu0
        %492 = vmatprep.mubr.f32.mxu0 0.0
        %493 = vmatmul.mubr.f32.gmra.mrb[0].mxu0 %v346
        %v494 = vpop.f32.mrb[0].mxu0
        %v495 = vadd.f32 0.0, %v494
        %v496 = vpop.f32.mrb[0].mxu0
        %497 = vmatprep.mubr.f32.mxu0 0.0
        %498 = vmatmul.mubr.f32.gmra.mrb[0].mxu0 %v349
        %v499 = vpop.f32.mrb[0].mxu0
        %v500 = vadd.f32 0.0, %v499
        %v501 = vpop.f32.mrb[0].mxu0
        %502 = vmatprep.mubr.f32.mxu0 0.0
        %503 = vmatmul.mubr.f32.gmra.mrb[0].mxu0 %v354
        %v504 = vpop.f32.mrb[0].mxu0
        %v505 = vadd.f32 0.0, %v504
        %v506 = vpop.f32.mrb[0].mxu0
        %507 = vmatprep.mubr.f32.mxu0 0.0
        %508 = vmatmul.mubr.f32.gmra.mrb[0].mxu0 %v357
        %v509 = vpop.f32.mrb[0].mxu0
        %v510 = vadd.f32 0.0, %v509
        %v511 = vpop.f32.mrb[0].mxu0
        %512 = vmatprep.mubr.f32.mxu0 0.0
        %513 = vmatmul.mubr.f32.gmra.mrb[0].mxu0 %v362
        %v514 = vpop.f32.mrb[0].mxu0
        %v515 = vadd.f32 0.0, %v514
        %v516 = vpop.f32.mrb[0].mxu0
        %517 = vmatprep.mubr.f32.mxu0 0.0
        %518 = vmatmul.mubr.f32.gmra.mrb[0].mxu0 %v365
        %v519 = vpop.f32.mrb[0].mxu0
        %v520 = vadd.f32 0.0, %v519
        %v521 = vpop.f32.mrb[0].mxu0
        %522 = vmatprep.mubr.f32.mxu0 0.0
        %523 = vmatmul.mubr.f32.gmra.mrb[0].mxu0 %v370
        %v524 = vpop.f32.mrb[0].mxu0
        %v525 = vadd.f32 0.0, %v524
        %v526 = vpop.f32.mrb[0].mxu0
        %527 = vmatprep.mubr.f32.mxu0 0.0
        %528 = vmatmul.mubr.f32.gmra.mrb[0].mxu0 %v373
        %v529 = vpop.f32.mrb[0].mxu0
        %v530 = vadd.f32 0.0, %v529
        %v531 = vpop.f32.mrb[0].mxu0
        %532 = vmatprep.mubr.f32.mxu0 0.0
        %533 = vmatmul.mubr.f32.gmra.mrb[0].mxu0 %v378
        %v534 = vpop.f32.mrb[0].mxu0
        %v535 = vadd.f32 0.0, %v534
        %v536 = vpop.f32.mrb[0].mxu0
        %537 = vmatprep.mubr.f32.mxu0 0.0
        %538 = vmatmul.mubr.f32.gmra.mrb[0].mxu0 %v381
        %v539 = vpop.f32.mrb[0].mxu0
        %v540 = vadd.f32 0.0, %v539
        %v541 = vpop.f32.mrb[0].mxu0
        %542 = vmatprep.mubr.f32.mxu0 0.0
        %543 = vmatmul.mubr.f32.gmra.mrb[0].mxu0 %v386
        %v544 = vpop.f32.mrb[0].mxu0
        %v545 = vadd.f32 0.0, %v544
        %v546 = vpop.f32.mrb[0].mxu0
        %547 = vmatprep.mubr.f32.mxu0 0.0
        %548 = vmatmul.mubr.f32.gmra.mrb[0].mxu0 %v389
        %v549 = vpop.f32.mrb[0].mxu0
        %v550 = vadd.f32 0.0, %v549
        %v551 = vpop.f32.mrb[0].mxu0
        %552 = vdwg.mxu0
        %vm553 = vcmask 31744
        %554 = vst.msk [vmem:[%s211] sm:$0xff] %vm553, %v475
        %555 = vst.msk [vmem:[%s211 + $0x8] sm:$0xff] %vm553, %v480
        %556 = vst.msk [vmem:[%s211 + $0x10] sm:$0xff] %vm553, %v485
        %557 = vst.msk [vmem:[%s211 + $0x18] sm:$0xff] %vm553, %v490
        %558 = vst.msk [vmem:[%s211 + $0x20] sm:$0xff] %vm553, %v495
        %559 = vst.msk [vmem:[%s211 + $0x28] sm:$0xff] %vm553, %v500
        %560 = vst.msk [vmem:[%s211 + $0x30] sm:$0xff] %vm553, %v505
        %561 = vst.msk [vmem:[%s211 + $0x38] sm:$0xff] %vm553, %v510
        %562 = vst.msk [vmem:[%s211 + $0x40] sm:$0xff] %vm553, %v515
        %563 = vst.msk [vmem:[%s211 + $0x48] sm:$0xff] %vm553, %v520
        %564 = vst.msk [vmem:[%s211 + $0x50] sm:$0xff] %vm553, %v525
        %565 = vst.msk [vmem:[%s211 + $0x58] sm:$0xff] %vm553, %v530
        %566 = vst.msk [vmem:[%s211 + $0x60] sm:$0xff] %vm553, %v535
        %567 = vst.msk [vmem:[%s211 + $0x68] sm:$0xff] %vm553, %v540
        %568 = vst.msk [vmem:[%s211 + $0x70] sm:$0xff] %vm553, %v545
        %569 = vst.msk [vmem:[%s211 + $0x78] sm:$0xff] %vm553, %v550
        %v570 = vpack.c.bf16 %v333, %v330
        %v571 = vpack.c.bf16 %v341, %v338
        %v572 = vpack.c.bf16 %v349, %v346
        %v573 = vpack.c.bf16 %v357, %v354
        %v574 = vpack.c.bf16 %v365, %v362
        %v575 = vpack.c.bf16 %v373, %v370
        %v576 = vpack.c.bf16 %v381, %v378
        %v577 = vpack.c.bf16 %v389, %v386
        %v586 = vunpack.c.l.b16 %v570
        %v587 = vunpack.c.h.b16 %v570
        %v588 = vunpack.c.l.b16 %v571
        %v589 = vunpack.c.h.b16 %v571
        %v590 = vunpack.c.l.b16 %v572
        %v591 = vunpack.c.h.b16 %v572
        %v592 = vunpack.c.l.b16 %v573
        %v593 = vunpack.c.h.b16 %v573
        %v594 = vunpack.c.l.b16 %v574
        %v595 = vunpack.c.h.b16 %v574
        %v596 = vunpack.c.l.b16 %v575
        %v597 = vunpack.c.h.b16 %v575
        %v598 = vunpack.c.l.b16 %v576
        %v599 = vunpack.c.h.b16 %v576
        %v600 = vunpack.c.l.b16 %v577
        %v601 = vunpack.c.h.b16 %v577
        %v602 = vpack.c.b16 %v586, %v586
        %v603 = vpack.c.b16 %v587, %v587
        %v604 = vpack.c.b16 %v588, %v588
        %v605 = vpack.c.b16 %v589, %v589
        %v606 = vpack.c.b16 %v590, %v590
        %v607 = vpack.c.b16 %v591, %v591
        %v608 = vpack.c.b16 %v592, %v592
        %v609 = vpack.c.b16 %v593, %v593
        %v610 = vpack.c.b16 %v594, %v594
        %v611 = vpack.c.b16 %v595, %v595
        %v612 = vpack.c.b16 %v596, %v596
        %v613 = vpack.c.b16 %v597, %v597
        %v614 = vpack.c.b16 %v598, %v598
        %v615 = vpack.c.b16 %v599, %v599
        %v616 = vpack.c.b16 %v600, %v600
        %v617 = vpack.c.b16 %v601, %v601
        %634 = vst [vmem:[%s192] sm:$0xf] %v602
        %635 = vst [vmem:[%s192 + $0x4] sm:$0xf] %v603
        %636 = vst [vmem:[%s192 + $0x8] sm:$0xf] %v604
        %637 = vst [vmem:[%s192 + $0xc] sm:$0xf] %v605
        %638 = vst [vmem:[%s192 + $0x10] sm:$0xf] %v606
        %639 = vst [vmem:[%s192 + $0x14] sm:$0xf] %v607
        %640 = vst [vmem:[%s192 + $0x18] sm:$0xf] %v608
        %641 = vst [vmem:[%s192 + $0x1c] sm:$0xf] %v609
        %642 = vst [vmem:[%s192 + $0x20] sm:$0xf] %v610
        %643 = vst [vmem:[%s192 + $0x24] sm:$0xf] %v611
        %644 = vst [vmem:[%s192 + $0x28] sm:$0xf] %v612
        %645 = vst [vmem:[%s192 + $0x2c] sm:$0xf] %v613
        %646 = vst [vmem:[%s192 + $0x30] sm:$0xf] %v614
        %647 = vst [vmem:[%s192 + $0x34] sm:$0xf] %v615
        %648 = vst [vmem:[%s192 + $0x38] sm:$0xf] %v616
        %649 = vst [vmem:[%s192 + $0x3c] sm:$0xf] %v617
        %s650 = sand.u32 %s95, 1
        %s651 = scalar_lea.sflag [#allocation3], %s650
        %s652 = sand.u32 %s95, 1
        %s653 = smul.addr %s652, 64
        %s654 = scalar_lea.vmem [#allocation2], %s653
        %s655 = smul.u32 16, %s19
        %p656 = scmp.lt.s32.totalorder %s655, 31
        %s657 = scalar_select %p656, %s655, 31
        %s658 = smul.addr %s657, 8
        %s659 = scalar_lea.vmem %s4, %s658
        // Predicated region
        $region33: #{tpu_custom_call.1} parent=31 // pred_check
          %p660 = pneg %p105
        $region34: #{tpu_custom_call.1} parent=31 // pred_check_branch
          %662 = sbr.rel (%p660) target = $region36
        $region35: #{tpu_custom_call.1} parent=31 // pred_region
          %s663 = smul.u32 16, %s19
          %s665 = ssub.s32 1024, 1024
          %666 = vsyncadd %s651, %s665
          %s667 = smul.addr %s663, 64
          %s668 = scalar_lea.hbm %s3, %s667
          %s669 = sshll.u32 %s654, 4
          %s670 = int_to_ptr.vmem [resolvable:$true] %s669
          %675 = dma.vmem_to_hbm [thread:$0]  %s670, 1024, %s668, %s651, 64, 64, 4
        $region36: #{tpu_custom_call.1} parent=31 // pred_fallthru
          _
        // Predicated region
        $region37: #{tpu_custom_call.1} parent=31 // pred_check
          %p676 = pneg %p131
        $region38: #{tpu_custom_call.1} parent=31 // pred_check_branch
          %678 = sbr.rel (%p676) target = $region40
        $region39: #{tpu_custom_call.1} parent=31 // pred_region
          %s679 = smul.u32 16, %s19
        $region40: #{tpu_custom_call.1} parent=31 // pred_fallthru
          _
      $region32: #{tpu_custom_call.1} parent=5 // pred_fallthru
        _
      %p680 = scmp.le.s32.totalorder 2, %s14
      // Predicated region
      $region41: #{tpu_custom_call.1} parent=5 // pred_check
        %p681 = pneg %p680
      $region42: #{tpu_custom_call.1} parent=5 // pred_check_branch
        %683 = sbr.rel (%p681) target = $region44
      $region43: #{tpu_custom_call.1} parent=5 // pred_region
        %s684 = ssub.s32 %s14, 2
        // Predicated region
        $region45: #{tpu_custom_call.1} parent=43 // pred_check
          %p685 = pneg %p111
        $region46: #{tpu_custom_call.1} parent=43 // pred_check_branch
          %687 = sbr.rel (%p685) target = $region48
        $region47: #{tpu_custom_call.1} parent=43 // pred_region
          %s688 = sand.u32 %s96, 1
          %s689 = scalar_lea.sflag [#allocation3], %s688
          %s690 = sand.u32 %s96, 1
          %s691 = smul.addr %s690, 64
          %s692 = scalar_lea.vmem [#allocation2], %s691
          %693 = dma.done %s689, 1024
        $region48: #{tpu_custom_call.1} parent=43 // pred_fallthru
          _
        // Predicated region
        $region49: #{tpu_custom_call.1} parent=43 // pred_check
          %p694 = pneg %p137
        $region50: #{tpu_custom_call.1} parent=43 // pred_check_branch
          %696 = sbr.rel (%p694) target = $region52
        $region51: #{tpu_custom_call.1} parent=43 // pred_region
          %s697 = smul.u32 16, %s20
          %p698 = scmp.lt.s32.totalorder %s697, 31
          %s699 = scalar_select %p698, %s697, 31
          %s700 = smul.addr %s699, 8
          %s701 = scalar_lea.vmem %s4, %s700
        $region52: #{tpu_custom_call.1} parent=43 // pred_fallthru
          _
      $region44: #{tpu_custom_call.1} parent=5 // pred_fallthru
        _
    $region6: #{tpu_custom_call.1} parent=1 // loop_footer
      %s18 = sadd.s32 1, %s14
    $region7: #{tpu_custom_call.1} parent=1 // loop_footer_branch
      %13 = sbr.rel target = $region3
    $region8: #{tpu_custom_call.1} parent=1 // loop_exit
      _
    %702 = vsyncpa [#allocation3], 1
    %s703 = scalar_lea.sflag [#allocation3], 1
    %704 = vsyncpa %s703, 1

</llo_original>
